<compile_context>
chip_gen: v6e
topology: v6e:2x2x1
jax: 0.10.0
libtpu: 0.0.40
codegen_flags: <defaults>
</compile_context>

<pallas_src>
import functools
import math

import jax
import jax.numpy as jnp
from jax.experimental import pallas as pl
from jax.experimental.pallas import tpu as pltpu


# ---------------------------------------------------------------------------
# Fused Pallas kernel: the whole TCN encoder (all TemporalBlocks) in one call.
#   per layer: causal dilated conv1 -> ReLU -> causal dilated conv2 -> ReLU
#              residual (1x1 conv / exact identity) -> add -> ReLU
# ---------------------------------------------------------------------------
def _tcn_fused_kernel(*refs, layer_meta, kernel_size, rows_per_block, seq_len,
                      compute_dtype):
    # refs = (x_ref, <per-layer weight refs...>, o_ref)
    x_ref = refs[0]
    o_ref = refs[-1]
    w_refs = refs[1:-1]

    L = seq_len
    R = rows_per_block          # rows in this block = (samples per tile) * L
    k = kernel_size

    # Per-sample causal time index, hoisted once for all taps / layers.
    t_idx = jax.lax.broadcasted_iota(jnp.int32, (R, 1), 0) % L

    # One causal mask per unique shift (reused across conv1/conv2 and across
    # layers that share a dilation).  JAX does not CSE broadcast_in_dim.
    all_shifts = sorted({(k - 1 - j) * d
                         for d, _ in layer_meta for j in range(k)} - {0})
    masks = {s: (t_idx >= s).astype(jnp.float32) for s in all_shifts if s < L}

    def causal_dilated_conv(h, wp_ref, b_ref, dilation):
        # out[t] = sum_j h[t - (k-1-j)*d] @ W_j, consolidated into one matmul:
        #   concat_j(shift_j(h)) @ packed_W   with packed_W[(j*Cin):(j+1)*Cin] = W_j
        taps = []
        for j in range(k):
            shift = (k - 1 - j) * dilation
            if shift == 0:
                taps.append(h)
            elif shift >= L:
                taps.append(jnp.zeros_like(h))
            else:
                rolled = jnp.roll(h, shift, axis=0)         # sublane roll (XLU)
                taps.append(rolled * masks[shift].astype(h.dtype))
        h_cat = jnp.concatenate(taps, axis=-1)              # (R, k*Cin)
        acc = jnp.dot(h_cat.astype(compute_dtype),
                      wp_ref[...].astype(compute_dtype),
                      preferred_element_type=jnp.float32)   # (R, Cout) on MXU
        return acc + b_ref[...]                             # (1, Cout) broadcast

    h = x_ref[...]                                          # (R, Cin0) f32
    idx = 0
    for dilation, has_downsample in layer_meta:
        w1p = w_refs[idx]; b1 = w_refs[idx + 1]
        w2p = w_refs[idx + 2]; b2 = w_refs[idx + 3]
        idx += 4

        h_in = h
        h = jnp.maximum(causal_dilated_conv(h_in, w1p, b1, dilation), 0.0)  # conv1+chomp+relu
        h = jnp.maximum(causal_dilated_conv(h, w2p, b2, dilation), 0.0)     # conv2+chomp+relu

        if has_downsample:
            wd = w_refs[idx]; bd = w_refs[idx + 1]
            idx += 2
            res = jnp.dot(h_in.astype(compute_dtype),
                          wd[...].astype(compute_dtype),
                          preferred_element_type=jnp.float32) + bd[...]
        else:
            res = h_in                                      # exact identity residual

        h = jnp.maximum(h + res, 0.0)

    assert idx == len(w_refs), "layer_meta inconsistent with weight refs"
    o_ref[...] = h.astype(o_ref.dtype)


def _choose_batch_tile(B, L, max_rows):
    """Largest divisor of B whose row count (bt*L) fits max_rows and is a
    multiple of 8 (sublane alignment); falls back to the whole batch."""
    for bt in range(B, 0, -1):
        if B % bt == 0 and bt * L <= max_rows and (bt * L) % 8 == 0:
            return bt
    return B


def tcn_encoder_forward(x_blc, params, kernel_size, *, mxu_dtype=jnp.float32,
                        max_rows_per_block=1024):
    """x_blc: (B, L, C_in) -- the tensor TCN_encoder.forward receives.
    Returns (B, C_out, L), matching self.network(x.permute(0, 2, 1))."""
    B, L, Cin0 = x_blc.shape
    M = B * L
    x_flat = x_blc.reshape(M, Cin0).astype(jnp.float32)     # free reshape in XLA

    bt = _choose_batch_tile(B, L, max_rows_per_block)
    num_tiles = B // bt
    R = bt * L                                              # rows per grid step

    inputs = [x_flat]
    in_specs = [pl.BlockSpec((R, Cin0), lambda i: (i, 0))]
    layer_meta = []
    for p in params:
        for arr in (p["w1p"], p["b1"], p["w2p"], p["b2"]):
            inputs.append(arr)
            in_specs.append(pl.BlockSpec(arr.shape, lambda i: (0, 0)))
        has_down = p["wd"] is not None
        if has_down:
            for arr in (p["wd"], p["bd"]):
                inputs.append(arr)
                in_specs.append(pl.BlockSpec(arr.shape, lambda i: (0, 0)))
        layer_meta.append((p["dilation"], has_down))

    Cout_last = params[-1]["w1p"].shape[1]
    kern = functools.partial(
        _tcn_fused_kernel,
        layer_meta=tuple(layer_meta),
        kernel_size=kernel_size,
        rows_per_block=R,
        seq_len=L,
        compute_dtype=mxu_dtype,
    )

    out_flat = pl.pallas_call(
        kern,
        out_shape=jax.ShapeDtypeStruct((M, Cout_last), jnp.float32),
        grid_spec=pltpu.PrefetchScalarGridSpec(
            num_scalar_prefetch=0,
            grid=(num_tiles,),                              # whole-sample batch tiles
            in_specs=in_specs,
            out_specs=pl.BlockSpec((R, Cout_last), lambda i: (i, 0)),
        ),
        compiler_params=pltpu.CompilerParams(
            dimension_semantics=("parallel",),              # tiles independent -> megacore
            vmem_limit_bytes=32 * 1024 * 1024,              # explicit, safe on v7x's 64 MiB
        ),
    )(*inputs)

    h = out_flat.reshape(B, L, Cout_last)
    return jnp.transpose(h, (0, 2, 1))                      # (B, C_out, L)


# ---------------------------------------------------------------------------
# Parameter construction (deterministic, weight-norm applied explicitly)
# ---------------------------------------------------------------------------
def _weight_norm_conv(vkey, gkey, cout, cin, k):
    # torch layout (cout, cin, k); w = g * v / ||v||  with norm over (cin, k)
    v = 0.01 * jax.random.normal(vkey, (cout, cin, k), jnp.float32)
    norm = jnp.sqrt(jnp.sum(v * v, axis=(1, 2), keepdims=True))
    g = jax.random.uniform(gkey, (cout, 1, 1), jnp.float32, minval=0.5, maxval=1.5)
    return g * v / norm


def _conv_bias(key, cout, fan_in):
    bound = 1.0 / math.sqrt(fan_in)
    return jax.random.uniform(key, (1, cout), jnp.float32, minval=-bound, maxval=bound)


def _pack_conv_weight(w_torch):
    # (cout, cin, k) -> (k*cin, cout); rows [j*cin:(j+1)*cin] correspond to tap j,
    # matching the lane-concat order of the shifted copies inside the kernel.
    cout, cin, k = w_torch.shape
    return jnp.transpose(w_torch, (2, 1, 0)).reshape(k * cin, cout)


def make_tcn_params(key, num_inputs, num_channels, kernel_size):
    params = []
    for i, cout in enumerate(num_channels):
        cin = num_inputs if i == 0 else num_channels[i - 1]
        dilation = 2 ** i
        key, k1, k2, k3, k4, k5, k6, k7, k8 = jax.random.split(key, 9)
        w1_t = _weight_norm_conv(k1, k2, cout, cin, kernel_size)       # (cout,cin,k)
        w2_t = _weight_norm_conv(k3, k4, cout, cout, kernel_size)
        b1 = _conv_bias(k5, cout, cin * kernel_size)
        b2 = _conv_bias(k6, cout, cout * kernel_size)
        if cin != cout:
            wd_t = 0.01 * jax.random.normal(k7, (cout, cin, 1), jnp.float32)
            wd = jnp.transpose(wd_t[:, :, 0], (1, 0))                  # (cin, cout)
            bd = _conv_bias(k8, cout, cin)
        else:
            wd_t = None
            wd = None                                                  # exact identity residual
            bd = None
        params.append(dict(
            w1p=_pack_conv_weight(w1_t),        # (k*cin, cout) consolidated-tap weight
            b1=b1,
            w2p=_pack_conv_weight(w2_t),        # (k*cout, cout)
            b2=b2,
            wd=wd, bd=bd,
            dilation=dilation,
            # torch-layout copies kept for the pure-JAX reference check
            w1_t=w1_t, w2_t=w2_t, wd_t=wd_t,
        ))
    return params


# ---------------------------------------------------------------------------
# Pure-JAX reference (lax.conv_general_dilated) for correctness checking
# ---------------------------------------------------------------------------
def _ref_causal_conv(x_ncl, w_torch, b, k, d):
    p = (k - 1) * d
    y = jax.lax.conv_general_dilated(
        x_ncl, w_torch, window_strides=(1,), padding=[(p, p)],
        rhs_dilation=(d,), dimension_numbers=("NCH", "OIH", "NCH"))
    y = y + b.reshape(1, -1, 1)
    return y[:, :, : x_ncl.shape[2]]  # Chomp1d


def tcn_encoder_reference(x_blc, params, kernel_size):
    h = jnp.transpose(x_blc, (0, 2, 1))  # (B, C, L) like torch
    for p in params:
        d = p["dilation"]
        out = jnp.maximum(_ref_causal_conv(h, p["w1_t"], p["b1"], kernel_size, d), 0.0)
        out = jnp.maximum(_ref_causal_conv(out, p["w2_t"], p["b2"], kernel_size, d), 0.0)
        if p["wd_t"] is not None:
            res = _ref_causal_conv(h, p["wd_t"], p["bd"], 1, 1)
        else:
            res = h
        h = jnp.maximum(out + res, 0.0)
    return h


# ---------------------------------------------------------------------------
if __name__ == "__main__":
    key = jax.random.PRNGKey(0)
    kx, kp = jax.random.split(key)

    # TCN_encoder(num_inputs=4, num_channels=[8, 8], kernel_size=2)
    num_inputs = 4
    num_channels = [8, 8]
    kernel_size = 2
    B, L = 2, 16

    x = jax.random.normal(kx, (B, L, num_inputs), jnp.float32)  # (batch, seq, feat)
    params = make_tcn_params(kp, num_inputs, num_channels, kernel_size)

    out = tcn_encoder_forward(x, params, kernel_size)
    out = jax.block_until_ready(out)

    ref = jax.block_until_ready(tcn_encoder_reference(x, params, kernel_size))
    assert out.shape == (B, num_channels[-1], L), out.shape
    assert jnp.max(jnp.abs(out - ref)) < 1e-5, float(jnp.max(jnp.abs(out - ref)))

    print("KERNEL_OK")
</pallas_src>

<mosaic_0001>
module attributes {stable_mosaic.version = 11 : i64} {
  func.func @_tcn_fused_kernel(%arg0: i32, %arg1: memref<32x4xf32, #tpu.memory_space<vmem>>, %arg2: memref<8x8xf32, #tpu.memory_space<vmem>>, %arg3: memref<1x8xf32, #tpu.memory_space<vmem>>, %arg4: memref<16x8xf32, #tpu.memory_space<vmem>>, %arg5: memref<1x8xf32, #tpu.memory_space<vmem>>, %arg6: memref<4x8xf32, #tpu.memory_space<vmem>>, %arg7: memref<1x8xf32, #tpu.memory_space<vmem>>, %arg8: memref<16x8xf32, #tpu.memory_space<vmem>>, %arg9: memref<1x8xf32, #tpu.memory_space<vmem>>, %arg10: memref<16x8xf32, #tpu.memory_space<vmem>>, %arg11: memref<1x8xf32, #tpu.memory_space<vmem>>, %arg12: memref<32x8xf32, #tpu.memory_space<vmem>>) attributes {dimension_semantics = [#tpu.dimension_semantics<parallel>], iteration_bounds = array<i64: 1>, scalar_prefetch = 0 : i64, scratch_operands = 0 : i64, tpu.core_type = #tpu.core_type<tc>, window_params = [{transform_indices = @transform_0, window_bounds = array<i64: 32, 4>}, {pipeline_mode = #tpu.pipeline_mode<synchronous>, transform_indices = @transform_1, window_bounds = array<i64: 8, 8>}, {pipeline_mode = #tpu.pipeline_mode<synchronous>, transform_indices = @transform_2, window_bounds = array<i64: 1, 8>}, {pipeline_mode = #tpu.pipeline_mode<synchronous>, transform_indices = @transform_3, window_bounds = array<i64: 16, 8>}, {pipeline_mode = #tpu.pipeline_mode<synchronous>, transform_indices = @transform_4, window_bounds = array<i64: 1, 8>}, {pipeline_mode = #tpu.pipeline_mode<synchronous>, transform_indices = @transform_5, window_bounds = array<i64: 4, 8>}, {pipeline_mode = #tpu.pipeline_mode<synchronous>, transform_indices = @transform_6, window_bounds = array<i64: 1, 8>}, {pipeline_mode = #tpu.pipeline_mode<synchronous>, transform_indices = @transform_7, window_bounds = array<i64: 16, 8>}, {pipeline_mode = #tpu.pipeline_mode<synchronous>, transform_indices = @transform_8, window_bounds = array<i64: 1, 8>}, {pipeline_mode = #tpu.pipeline_mode<synchronous>, transform_indices = @transform_9, window_bounds = array<i64: 16, 8>}, {pipeline_mode = #tpu.pipeline_mode<synchronous>, transform_indices = @transform_10, window_bounds = array<i64: 1, 8>}, {transform_indices = @transform_11, window_bounds = array<i64: 32, 8>}]} {
    %0 = tpu.iota {dimensions = array<i32: 0>} : vector<32x1xi32>
    %c16_i32 = arith.constant 16 : i32
    %c0_i32 = arith.constant 0 : i32
    %1 = arith.cmpi eq, %c16_i32, %c0_i32 : i32
    %c1_i32 = arith.constant 1 : i32
    %2 = arith.select %1, %c1_i32, %c16_i32 : i32
    %3 = vector.broadcast %2 : i32 to vector<32x1xi32>
    %4 = arith.remsi %0, %3 : vector<32x1xi32>
    %c0_i32_0 = arith.constant 0 : i32
    %5 = vector.broadcast %c0_i32_0 : i32 to vector<32x1xi32>
    %6 = arith.cmpi ne, %4, %5 : vector<32x1xi32>
    %c0_i32_1 = arith.constant 0 : i32
    %7 = vector.broadcast %c0_i32_1 : i32 to vector<32x1xi32>
    %8 = arith.cmpi slt, %4, %7 : vector<32x1xi32>
    %c0_i32_2 = arith.constant 0 : i32
    %9 = arith.cmpi slt, %2, %c0_i32_2 : i32
    %10 = vector.broadcast %9 : i1 to vector<32x1xi1>
    %11 = vector.broadcast %10 : vector<32x1xi1> to vector<32x1xi1>
    %12 = arith.xori %8, %11 : vector<32x1xi1>
    %13 = arith.andi %12, %6 : vector<32x1xi1>
    %14 = vector.broadcast %2 : i32 to vector<32x1xi32>
    %15 = arith.addi %4, %14 : vector<32x1xi32>
    %16 = arith.select %13, %15, %4 : vector<32x1xi1>, vector<32x1xi32>
    %c1_i32_3 = arith.constant 1 : i32
    %17 = vector.broadcast %c1_i32_3 : i32 to vector<32x1xi32>
    %18 = arith.cmpi sge, %16, %17 : vector<32x1xi32>
    %19 = arith.extui %18 : vector<32x1xi1> to vector<32x1xi32>
    %20 = arith.sitofp %19 : vector<32x1xi32> to vector<32x1xf32>
    %c2_i32 = arith.constant 2 : i32
    %21 = vector.broadcast %c2_i32 : i32 to vector<32x1xi32>
    %22 = arith.cmpi sge, %16, %21 : vector<32x1xi32>
    %23 = arith.extui %22 : vector<32x1xi1> to vector<32x1xi32>
    %24 = arith.sitofp %23 : vector<32x1xi32> to vector<32x1xf32>
    %c0 = arith.constant 0 : index
    %c0_4 = arith.constant 0 : index
    %25 = vector.load %arg1[%c0, %c0_4] : memref<32x4xf32, #tpu.memory_space<vmem>>, vector<32x4xf32>
    %26 = vector.extract_strided_slice %25 {offsets = [31, 0], sizes = [1, 4], strides = [1, 1]} : vector<32x4xf32> to vector<1x4xf32>
    %27 = vector.extract_strided_slice %25 {offsets = [0, 0], sizes = [31, 4], strides = [1, 1]} : vector<32x4xf32> to vector<31x4xf32>
    %28 = tpu.concatenate %26, %27 in 0 : vector<1x4xf32>, vector<31x4xf32> -> vector<32x4xf32>
    %29 = vector.broadcast %20 : vector<32x1xf32> to vector<32x4xf32>
    %30 = arith.mulf %28, %29 : vector<32x4xf32>
    %31 = tpu.concatenate %30, %25 in 1 : vector<32x4xf32>, vector<32x4xf32> -> vector<32x8xf32>
    %c0_5 = arith.constant 0 : index
    %c0_6 = arith.constant 0 : index
    %32 = vector.load %arg2[%c0_5, %c0_6] : memref<8x8xf32, #tpu.memory_space<vmem>>, vector<8x8xf32>
    %cst = arith.constant dense<0.000000e+00> : vector<32x8xf32>
    %33 = tpu.matmul %31, %32, %cst {dimension_numbers = #tpu.dot_dimension_numbers<[1], [0], [0], [1], [0, 0, 1, 1], [], []>} : vector<32x8xf32>, vector<8x8xf32>, vector<32x8xf32> -> vector<32x8xf32>
    %c0_7 = arith.constant 0 : index
    %c0_8 = arith.constant 0 : index
    %34 = vector.load %arg3[%c0_7, %c0_8] : memref<1x8xf32, #tpu.memory_space<vmem>>, vector<1x8xf32>
    %35 = vector.broadcast %34 : vector<1x8xf32> to vector<32x8xf32>
    %36 = arith.addf %33, %35 : vector<32x8xf32>
    %cst_9 = arith.constant 0.000000e+00 : f32
    %37 = vector.broadcast %cst_9 : f32 to vector<32x8xf32>
    %38 = arith.maximumf %36, %37 : vector<32x8xf32>
    %39 = vector.extract_strided_slice %38 {offsets = [31, 0], sizes = [1, 8], strides = [1, 1]} : vector<32x8xf32> to vector<1x8xf32>
    %40 = vector.extract_strided_slice %38 {offsets = [0, 0], sizes = [31, 8], strides = [1, 1]} : vector<32x8xf32> to vector<31x8xf32>
    %41 = tpu.concatenate %39, %40 in 0 : vector<1x8xf32>, vector<31x8xf32> -> vector<32x8xf32>
    %42 = vector.broadcast %20 : vector<32x1xf32> to vector<32x8xf32>
    %43 = arith.mulf %41, %42 : vector<32x8xf32>
    %44 = tpu.concatenate %43, %38 in 1 : vector<32x8xf32>, vector<32x8xf32> -> vector<32x16xf32>
    %c0_10 = arith.constant 0 : index
    %c0_11 = arith.constant 0 : index
    %45 = vector.load %arg4[%c0_10, %c0_11] : memref<16x8xf32, #tpu.memory_space<vmem>>, vector<16x8xf32>
    %cst_12 = arith.constant dense<0.000000e+00> : vector<32x8xf32>
    %46 = tpu.matmul %44, %45, %cst_12 {dimension_numbers = #tpu.dot_dimension_numbers<[1], [0], [0], [1], [0, 0, 1, 1], [], []>} : vector<32x16xf32>, vector<16x8xf32>, vector<32x8xf32> -> vector<32x8xf32>
    %c0_13 = arith.constant 0 : index
    %c0_14 = arith.constant 0 : index
    %47 = vector.load %arg5[%c0_13, %c0_14] : memref<1x8xf32, #tpu.memory_space<vmem>>, vector<1x8xf32>
    %48 = vector.broadcast %47 : vector<1x8xf32> to vector<32x8xf32>
    %49 = arith.addf %46, %48 : vector<32x8xf32>
    %cst_15 = arith.constant 0.000000e+00 : f32
    %50 = vector.broadcast %cst_15 : f32 to vector<32x8xf32>
    %51 = arith.maximumf %49, %50 : vector<32x8xf32>
    %c0_16 = arith.constant 0 : index
    %c0_17 = arith.constant 0 : index
    %52 = vector.load %arg6[%c0_16, %c0_17] : memref<4x8xf32, #tpu.memory_space<vmem>>, vector<4x8xf32>
    %cst_18 = arith.constant dense<0.000000e+00> : vector<32x8xf32>
    %53 = tpu.matmul %25, %52, %cst_18 {dimension_numbers = #tpu.dot_dimension_numbers<[1], [0], [0], [1], [0, 0, 1, 1], [], []>} : vector<32x4xf32>, vector<4x8xf32>, vector<32x8xf32> -> vector<32x8xf32>
    %c0_19 = arith.constant 0 : index
    %c0_20 = arith.constant 0 : index
    %54 = vector.load %arg7[%c0_19, %c0_20] : memref<1x8xf32, #tpu.memory_space<vmem>>, vector<1x8xf32>
    %55 = vector.broadcast %54 : vector<1x8xf32> to vector<32x8xf32>
    %56 = arith.addf %53, %55 : vector<32x8xf32>
    %57 = arith.addf %51, %56 : vector<32x8xf32>
    %cst_21 = arith.constant 0.000000e+00 : f32
    %58 = vector.broadcast %cst_21 : f32 to vector<32x8xf32>
    %59 = arith.maximumf %57, %58 : vector<32x8xf32>
    %60 = vector.extract_strided_slice %59 {offsets = [30, 0], sizes = [2, 8], strides = [1, 1]} : vector<32x8xf32> to vector<2x8xf32>
    %61 = vector.extract_strided_slice %59 {offsets = [0, 0], sizes = [30, 8], strides = [1, 1]} : vector<32x8xf32> to vector<30x8xf32>
    %62 = tpu.concatenate %60, %61 in 0 : vector<2x8xf32>, vector<30x8xf32> -> vector<32x8xf32>
    %63 = vector.broadcast %24 : vector<32x1xf32> to vector<32x8xf32>
    %64 = arith.mulf %62, %63 : vector<32x8xf32>
    %65 = tpu.concatenate %64, %59 in 1 : vector<32x8xf32>, vector<32x8xf32> -> vector<32x16xf32>
    %c0_22 = arith.constant 0 : index
    %c0_23 = arith.constant 0 : index
    %66 = vector.load %arg8[%c0_22, %c0_23] : memref<16x8xf32, #tpu.memory_space<vmem>>, vector<16x8xf32>
    %cst_24 = arith.constant dense<0.000000e+00> : vector<32x8xf32>
    %67 = tpu.matmul %65, %66, %cst_24 {dimension_numbers = #tpu.dot_dimension_numbers<[1], [0], [0], [1], [0, 0, 1, 1], [], []>} : vector<32x16xf32>, vector<16x8xf32>, vector<32x8xf32> -> vector<32x8xf32>
    %c0_25 = arith.constant 0 : index
    %c0_26 = arith.constant 0 : index
    %68 = vector.load %arg9[%c0_25, %c0_26] : memref<1x8xf32, #tpu.memory_space<vmem>>, vector<1x8xf32>
    %69 = vector.broadcast %68 : vector<1x8xf32> to vector<32x8xf32>
    %70 = arith.addf %67, %69 : vector<32x8xf32>
    %cst_27 = arith.constant 0.000000e+00 : f32
    %71 = vector.broadcast %cst_27 : f32 to vector<32x8xf32>
    %72 = arith.maximumf %70, %71 : vector<32x8xf32>
    %73 = vector.extract_strided_slice %72 {offsets = [30, 0], sizes = [2, 8], strides = [1, 1]} : vector<32x8xf32> to vector<2x8xf32>
    %74 = vector.extract_strided_slice %72 {offsets = [0, 0], sizes = [30, 8], strides = [1, 1]} : vector<32x8xf32> to vector<30x8xf32>
    %75 = tpu.concatenate %73, %74 in 0 : vector<2x8xf32>, vector<30x8xf32> -> vector<32x8xf32>
    %76 = vector.broadcast %24 : vector<32x1xf32> to vector<32x8xf32>
    %77 = arith.mulf %75, %76 : vector<32x8xf32>
    %78 = tpu.concatenate %77, %72 in 1 : vector<32x8xf32>, vector<32x8xf32> -> vector<32x16xf32>
    %c0_28 = arith.constant 0 : index
    %c0_29 = arith.constant 0 : index
    %79 = vector.load %arg10[%c0_28, %c0_29] : memref<16x8xf32, #tpu.memory_space<vmem>>, vector<16x8xf32>
    %cst_30 = arith.constant dense<0.000000e+00> : vector<32x8xf32>
    %80 = tpu.matmul %78, %79, %cst_30 {dimension_numbers = #tpu.dot_dimension_numbers<[1], [0], [0], [1], [0, 0, 1, 1], [], []>} : vector<32x16xf32>, vector<16x8xf32>, vector<32x8xf32> -> vector<32x8xf32>
    %c0_31 = arith.constant 0 : index
    %c0_32 = arith.constant 0 : index
    %81 = vector.load %arg11[%c0_31, %c0_32] : memref<1x8xf32, #tpu.memory_space<vmem>>, vector<1x8xf32>
    %82 = vector.broadcast %81 : vector<1x8xf32> to vector<32x8xf32>
    %83 = arith.addf %80, %82 : vector<32x8xf32>
    %cst_33 = arith.constant 0.000000e+00 : f32
    %84 = vector.broadcast %cst_33 : f32 to vector<32x8xf32>
    %85 = arith.maximumf %83, %84 : vector<32x8xf32>
    %86 = arith.addf %85, %59 : vector<32x8xf32>
    %cst_34 = arith.constant 0.000000e+00 : f32
    %87 = vector.broadcast %cst_34 : f32 to vector<32x8xf32>
    %88 = arith.maximumf %86, %87 : vector<32x8xf32>
    %c0_35 = arith.constant 0 : index
    %c0_36 = arith.constant 0 : index
    %89 = vector.load %arg12[%c0_35, %c0_36] : memref<32x8xf32, #tpu.memory_space<vmem>>, vector<32x8xf32>
    tpu.vector_store %arg12[%c0_35, %c0_36], %88 {strides = array<i32>} : memref<32x8xf32, #tpu.memory_space<vmem>>, vector<32x8xf32>,
    return
  }
  func.func @transform_0(%arg0: i32) -> (i32, i32) {
    %c0_i32 = arith.constant 0 : i32
    %c0_i32_0 = arith.constant 0 : i32
    return %arg0, %c0_i32 : i32, i32
  }
  func.func @transform_1(%arg0: i32) -> (i32, i32) {
    %c0_i32 = arith.constant 0 : i32
    %c0_i32_0 = arith.constant 0 : i32
    %c0_i32_1 = arith.constant 0 : i32
    return %c0_i32, %c0_i32_0 : i32, i32
  }
  func.func @transform_2(%arg0: i32) -> (i32, i32) {
    %c0_i32 = arith.constant 0 : i32
    %c0_i32_0 = arith.constant 0 : i32
    %c0_i32_1 = arith.constant 0 : i32
    return %c0_i32, %c0_i32_0 : i32, i32
  }
  func.func @transform_3(%arg0: i32) -> (i32, i32) {
    %c0_i32 = arith.constant 0 : i32
    %c0_i32_0 = arith.constant 0 : i32
    %c0_i32_1 = arith.constant 0 : i32
    return %c0_i32, %c0_i32_0 : i32, i32
  }
  func.func @transform_4(%arg0: i32) -> (i32, i32) {
    %c0_i32 = arith.constant 0 : i32
    %c0_i32_0 = arith.constant 0 : i32
    %c0_i32_1 = arith.constant 0 : i32
    return %c0_i32, %c0_i32_0 : i32, i32
  }
  func.func @transform_5(%arg0: i32) -> (i32, i32) {
    %c0_i32 = arith.constant 0 : i32
    %c0_i32_0 = arith.constant 0 : i32
    %c0_i32_1 = arith.constant 0 : i32
    return %c0_i32, %c0_i32_0 : i32, i32
  }
  func.func @transform_6(%arg0: i32) -> (i32, i32) {
    %c0_i32 = arith.constant 0 : i32
    %c0_i32_0 = arith.constant 0 : i32
    %c0_i32_1 = arith.constant 0 : i32
    return %c0_i32, %c0_i32_0 : i32, i32
  }
  func.func @transform_7(%arg0: i32) -> (i32, i32) {
    %c0_i32 = arith.constant 0 : i32
    %c0_i32_0 = arith.constant 0 : i32
    %c0_i32_1 = arith.constant 0 : i32
    return %c0_i32, %c0_i32_0 : i32, i32
  }
  func.func @transform_8(%arg0: i32) -> (i32, i32) {
    %c0_i32 = arith.constant 0 : i32
    %c0_i32_0 = arith.constant 0 : i32
    %c0_i32_1 = arith.constant 0 : i32
    return %c0_i32, %c0_i32_0 : i32, i32
  }
  func.func @transform_9(%arg0: i32) -> (i32, i32) {
    %c0_i32 = arith.constant 0 : i32
    %c0_i32_0 = arith.constant 0 : i32
    %c0_i32_1 = arith.constant 0 : i32
    return %c0_i32, %c0_i32_0 : i32, i32
  }
  func.func @transform_10(%arg0: i32) -> (i32, i32) {
    %c0_i32 = arith.constant 0 : i32
    %c0_i32_0 = arith.constant 0 : i32
    %c0_i32_1 = arith.constant 0 : i32
    return %c0_i32, %c0_i32_0 : i32, i32
  }
  func.func @transform_11(%arg0: i32) -> (i32, i32) {
    %c0_i32 = arith.constant 0 : i32
    %c0_i32_0 = arith.constant 0 : i32
    return %arg0, %c0_i32 : i32, i32
  }
}

</mosaic_0001>

<llo_original>
// kernel: tpu_custom_call.1
$region0: #{tpu_custom_call.1}
  #allocation0 [shape = 'u32[]', space=smem, size = 0x4, offset = 0x4, fixed_abs, tag = 'smem constant byte address 0x4 - core index']
  #allocation1 [shape = 'u32[144,128]{1,0:T(1,128)}', space=vmem, size = 0x12000, scoped, tag = 'internal scratch']
  %s0 = inlined_call_operand.vmem [shape: f32[32,4], index: 0, kind: input, shape index: {}]
  %s1 = inlined_call_operand.vmem [shape: f32[8,8], index: 1, kind: input, shape index: {}]
  %s2 = inlined_call_operand.vmem [shape: f32[1,8], index: 2, kind: input, shape index: {}]
  %s3 = inlined_call_operand.vmem [shape: f32[16,8], index: 3, kind: input, shape index: {}]
  %s4 = inlined_call_operand.vmem [shape: f32[1,8], index: 4, kind: input, shape index: {}]
  %s5 = inlined_call_operand.vmem [shape: f32[4,8], index: 5, kind: input, shape index: {}]
  %s6 = inlined_call_operand.vmem [shape: f32[1,8], index: 6, kind: input, shape index: {}]
  %s7 = inlined_call_operand.vmem [shape: f32[16,8], index: 7, kind: input, shape index: {}]
  %s8 = inlined_call_operand.vmem [shape: f32[1,8], index: 8, kind: input, shape index: {}]
  %s9 = inlined_call_operand.vmem [shape: f32[16,8], index: 9, kind: input, shape index: {}]
  %s10 = inlined_call_operand.vmem [shape: f32[1,8], index: 10, kind: input, shape index: {}]
  %s11 = inlined_call_operand.vmem [shape: f32[32,8], index: 11, kind: output, shape index: {}]
  %s12 = sld [smem:[#allocation0]]
  $region54: #{tpu_custom_call.1} parent=0
    _
  %s14 = ssub.s32 1, %s12
  %s15 = scalar_select 0, %s14, %s12
  // Predicated region
  $region2: #{tpu_custom_call.1} parent=0 // pred_check
    _
  $region3: #{tpu_custom_call.1} parent=0 // pred_check_branch
    %17 = sbr.rel (0) target = $region5
  $region4: #{tpu_custom_call.1} parent=0 // pred_region
    _
  $region5: #{tpu_custom_call.1} parent=0 // pred_fallthru
    _
  // Predicated region
  $region6: #{tpu_custom_call.1} parent=0 // pred_check
    _
  $region7: #{tpu_custom_call.1} parent=0 // pred_check_branch
    %19 = sbr.rel (0) target = $region9
  $region8: #{tpu_custom_call.1} parent=0 // pred_region
    _
  $region9: #{tpu_custom_call.1} parent=0 // pred_fallthru
    _
  // Predicated region
  $region10: #{tpu_custom_call.1} parent=0 // pred_check
    _
  $region11: #{tpu_custom_call.1} parent=0 // pred_check_branch
    %21 = sbr.rel (0) target = $region13
  $region12: #{tpu_custom_call.1} parent=0 // pred_region
    _
  $region13: #{tpu_custom_call.1} parent=0 // pred_fallthru
    _
  // Predicated region
  $region14: #{tpu_custom_call.1} parent=0 // pred_check
    _
  $region15: #{tpu_custom_call.1} parent=0 // pred_check_branch
    %23 = sbr.rel (0) target = $region17
  $region16: #{tpu_custom_call.1} parent=0 // pred_region
    _
  $region17: #{tpu_custom_call.1} parent=0 // pred_fallthru
    _
  // Predicated region
  $region18: #{tpu_custom_call.1} parent=0 // pred_check
    _
  $region19: #{tpu_custom_call.1} parent=0 // pred_check_branch
    %25 = sbr.rel (0) target = $region21
  $region20: #{tpu_custom_call.1} parent=0 // pred_region
    _
  $region21: #{tpu_custom_call.1} parent=0 // pred_fallthru
    _
  // Predicated region
  $region22: #{tpu_custom_call.1} parent=0 // pred_check
    _
  $region23: #{tpu_custom_call.1} parent=0 // pred_check_branch
    %27 = sbr.rel (0) target = $region25
  $region24: #{tpu_custom_call.1} parent=0 // pred_region
    _
  $region25: #{tpu_custom_call.1} parent=0 // pred_fallthru
    _
  // Predicated region
  $region26: #{tpu_custom_call.1} parent=0 // pred_check
    _
  $region27: #{tpu_custom_call.1} parent=0 // pred_check_branch
    %29 = sbr.rel (0) target = $region29
  $region28: #{tpu_custom_call.1} parent=0 // pred_region
    _
  $region29: #{tpu_custom_call.1} parent=0 // pred_fallthru
    _
  // Predicated region
  $region30: #{tpu_custom_call.1} parent=0 // pred_check
    _
  $region31: #{tpu_custom_call.1} parent=0 // pred_check_branch
    %31 = sbr.rel (0) target = $region33
  $region32: #{tpu_custom_call.1} parent=0 // pred_region
    _
  $region33: #{tpu_custom_call.1} parent=0 // pred_fallthru
    _
  // Predicated region
  $region34: #{tpu_custom_call.1} parent=0 // pred_check
    _
  $region35: #{tpu_custom_call.1} parent=0 // pred_check_branch
    %33 = sbr.rel (0) target = $region37
  $region36: #{tpu_custom_call.1} parent=0 // pred_region
    _
  $region37: #{tpu_custom_call.1} parent=0 // pred_fallthru
    _
  // Predicated region
  $region38: #{tpu_custom_call.1} parent=0 // pred_check
    _
  $region39: #{tpu_custom_call.1} parent=0 // pred_check_branch
    %35 = sbr.rel (0) target = $region41
  $region40: #{tpu_custom_call.1} parent=0 // pred_region
    _
  $region41: #{tpu_custom_call.1} parent=0 // pred_fallthru
    _
  // Predicated region
  $region42: #{tpu_custom_call.1} parent=0 // pred_check
    _
  $region43: #{tpu_custom_call.1} parent=0 // pred_check_branch
    %37 = sbr.rel (0) target = $region45
  $region44: #{tpu_custom_call.1} parent=0 // pred_region
    _
  $region45: #{tpu_custom_call.1} parent=0 // pred_fallthru
    _
  %v38 = vlaneseq
  %v39 = vshrl.u32 %v38, 7
  %v40 = vadd.s32 %v39, 8
  %v41 = vadd.s32 %v39, 16
  %v42 = vadd.s32 %v39, 24
  %vm43 = vcmp.lt.s32.totalorder %v39, 0
  %v44 = vsub.s32 0, %v39
  %v45 = vsel %vm43, %v44, %v39
  %v46 = vshrl.u32 %v45, 4
  %v47 = vand.u32 %v45, 15
  %v48 = vsub.s32 0, %v47
  %v49 = vsel %vm43, %v48, %v47
  %vm50 = vcmp.lt.s32.totalorder %v40, 0
  %v51 = vsub.s32 0, %v40
  %v52 = vsel %vm50, %v51, %v40
  %v53 = vshrl.u32 %v52, 4
  %v54 = vand.u32 %v52, 15
  %v55 = vsub.s32 0, %v54
  %v56 = vsel %vm50, %v55, %v54
  %vm57 = vcmp.lt.s32.totalorder %v41, 0
  %v58 = vsub.s32 0, %v41
  %v59 = vsel %vm57, %v58, %v41
  %v60 = vshrl.u32 %v59, 4
  %v61 = vand.u32 %v59, 15
  %v62 = vsub.s32 0, %v61
  %v63 = vsel %vm57, %v62, %v61
  %vm64 = vcmp.lt.s32.totalorder %v42, 0
  %v65 = vsub.s32 0, %v42
  %v66 = vsel %vm64, %v65, %v42
  %v67 = vshrl.u32 %v66, 4
  %v68 = vand.u32 %v66, 15
  %v69 = vsub.s32 0, %v68
  %v70 = vsel %vm64, %v69, %v68
  %vm71 = vcmp.ne.s32.totalorder %v49, 0
  %vm72 = vcmp.ne.s32.totalorder %v56, 0
  %vm73 = vcmp.ne.s32.totalorder %v63, 0
  %vm74 = vcmp.ne.s32.totalorder %v70, 0
  %vm75 = vcmp.lt.s32.totalorder %v49, 0
  %vm76 = vcmp.lt.s32.totalorder %v56, 0
  %vm77 = vcmp.lt.s32.totalorder %v63, 0
  %vm78 = vcmp.lt.s32.totalorder %v70, 0
  %vm79 = vmand %vm75, %vm71
  %vm80 = vmand %vm76, %vm72
  %vm81 = vmand %vm77, %vm73
  %vm82 = vmand %vm78, %vm74
  %v83 = vadd.s32 %v49, 16
  %v84 = vadd.s32 %v56, 16
  %v85 = vadd.s32 %v63, 16
  %v86 = vadd.s32 %v70, 16
  %v87 = vsel %vm79, %v83, %v49
  %v88 = vsel %vm80, %v84, %v56
  %v89 = vsel %vm81, %v85, %v63
  %v90 = vsel %vm82, %v86, %v70
  %vm91 = vcmp.ge.s32.totalorder %v87, 1
  %vm92 = vcmp.ge.s32.totalorder %v88, 1
  %vm93 = vcmp.ge.s32.totalorder %v89, 1
  %vm94 = vcmp.ge.s32.totalorder %v90, 1
  %v95 = vsel %vm91, 1, 0
  %v96 = vsel %vm92, 1, 0
  %v97 = vsel %vm93, 1, 0
  %v98 = vsel %vm94, 1, 0
  %v99 = vcvt.s32.f32 %v95
  %v100 = vcvt.s32.f32 %v96
  %v101 = vcvt.s32.f32 %v97
  %v102 = vcvt.s32.f32 %v98
  %vm103 = vcmp.ge.s32.totalorder %v87, 2
  %vm104 = vcmp.ge.s32.totalorder %v88, 2
  %vm105 = vcmp.ge.s32.totalorder %v89, 2
  %vm106 = vcmp.ge.s32.totalorder %v90, 2
  %v107 = vsel %vm103, 1, 0
  %v108 = vsel %vm104, 1, 0
  %v109 = vsel %vm105, 1, 0
  %v110 = vsel %vm106, 1, 0
  %v111 = vcvt.s32.f32 %v107
  %v112 = vcvt.s32.f32 %v108
  %v113 = vcvt.s32.f32 %v109
  %v114 = vcvt.s32.f32 %v110
  %v115 = vld [vmem:[%s0] sm:$0xff]
  %v116 = vld [vmem:[%s0 + $0x8] sm:$0xff]
  %v117 = vld [vmem:[%s0 + $0x10] sm:$0xff]
  %v118 = vld [vmem:[%s0 + $0x18] sm:$0xff]
  %v120 = vrot.slane %v118, 7
  %vm125 = vcmask 1040384
  %v126 = vrot.slane %v115, 7
  %v127 = vrot.slane %v116, 7
  %v128 = vsel %vm125, %v126, %v127
  %v129 = vrot.slane %v117, 7
  %v130 = vsel %vm125, %v127, %v129
  %v131 = vsel %vm125, %v129, %v120
  %v136 = vsel %vm125, %v120, %v126
  %v137 = vmul.f32 %v136, %v99
  %v138 = vmul.f32 %v128, %v100
  %v139 = vmul.f32 %v130, %v101
  %v140 = vmul.f32 %v131, %v102
  %141 = vrot.lane.b32.xlu0 %v115, 4
  %v142 = vpop.permute.xlu0 %141
  %143 = vrot.lane.b32.xlu0 %v116, 4
  %v144 = vpop.permute.xlu0 %143
  %145 = vrot.lane.b32.xlu0 %v117, 4
  %v146 = vpop.permute.xlu0 %145
  %147 = vrot.lane.b32.xlu0 %v118, 4
  %v148 = vpop.permute.xlu0 %147
  %vm153 = vcmask 31744
  %v154 = vsel %vm153, %v137, %v142
  %v155 = vsel %vm153, %v138, %v144
  %v156 = vsel %vm153, %v139, %v146
  %v157 = vsel %vm153, %v140, %v148
  %v158 = vld [vmem:[%s1] sm:$0xff]
  %v159 = vld [vmem:[%s2] sm:$0x1]
  %v161 = vlaneseq
  %v162 = vshrl.u32 %v161, 7
  %v163 = vsub.s32 0, %v162
  %v164 = vrot.slane %v159, %v163
  %vm166 = vcmask 64512
  %v168 = vsel %vm166, %v154, 0
  %v171 = vsel %vm166, %v155, 0
  %v174 = vsel %vm166, %v156, 0
  %v177 = vsel %vm166, %v157, 0
  %179 = vmatprep.subr.mxu0 0.0
  %180 = vmatpush1.msra.mxu0 0.0
  %181 = vmatprep.subr.mxu0 0.0
  %182 = vmatpush1.msra.mxu0 0.0
  %183 = vmatprep.subr.mxu0 0.0
  %184 = vmatpush1.msra.mxu0 0.0
  %185 = vmatprep.subr.mxu0 0.0
  %186 = vmatpush1.msra.mxu0 0.0
  %187 = vmatprep.subr.mxu0 0.0
  %188 = vmatpush1.msra.mxu0 0.0
  %189 = vmatprep.subr.mxu0 0.0
  %190 = vmatpush1.msra.mxu0 0.0
  %191 = vmatprep.subr.mxu0 0.0
  %192 = vmatpush1.msra.mxu0 0.0
  %193 = vmatprep.subr.mxu0 0.0
  %194 = vmatpush1.msra.mxu0 0.0
  %195 = vmatprep.subr.mxu0 0.0
  %196 = vmatpush1.msra.mxu0 0.0
  %197 = vmatprep.subr.mxu0 0.0
  %198 = vmatpush1.msra.mxu0 0.0
  %199 = vmatprep.subr.mxu0 0.0
  %200 = vmatpush1.msra.mxu0 0.0
  %201 = vmatprep.subr.mxu0 0.0
  %202 = vmatpush1.msra.mxu0 0.0
  %203 = vmatprep.subr.mxu0 0.0
  %204 = vmatpush1.msra.mxu0 0.0
  %205 = vmatprep.subr.mxu0 0.0
  %206 = vmatpush1.msra.mxu0 0.0
  %207 = vmatprep.subr.mxu0 0.0
  %208 = vmatpush1.msra.mxu0 0.0
  %209 = vmatprep.subr.mxu0 0.0
  %210 = vmatpush1.msra.mxu0 %v158
  %211 = vmatprep.subr.mxu0 0.0
  %212 = vmatpush2.msra.mxu0 0.0
  %213 = vmatprep.subr.mxu0 0.0
  %214 = vmatpush2.msra.mxu0 0.0
  %215 = vmatprep.subr.mxu0 0.0
  %216 = vmatpush2.msra.mxu0 0.0
  %217 = vmatprep.subr.mxu0 0.0
  %218 = vmatpush2.msra.mxu0 0.0
  %219 = vmatprep.subr.mxu0 0.0
  %220 = vmatpush2.msra.mxu0 0.0
  %221 = vmatprep.subr.mxu0 0.0
  %222 = vmatpush2.msra.mxu0 0.0
  %223 = vmatprep.subr.mxu0 0.0
  %224 = vmatpush2.msra.mxu0 0.0
  %225 = vmatprep.subr.mxu0 0.0
  %226 = vmatpush2.msra.mxu0 0.0
  %227 = vmatprep.subr.mxu0 0.0
  %228 = vmatpush2.msra.mxu0 0.0
  %229 = vmatprep.subr.mxu0 0.0
  %230 = vmatpush2.msra.mxu0 0.0
  %231 = vmatprep.subr.mxu0 0.0
  %232 = vmatpush2.msra.mxu0 0.0
  %233 = vmatprep.subr.mxu0 0.0
  %234 = vmatpush2.msra.mxu0 0.0
  %235 = vmatprep.subr.mxu0 0.0
  %236 = vmatpush2.msra.mxu0 0.0
  %237 = vmatprep.subr.mxu0 0.0
  %238 = vmatpush2.msra.mxu0 0.0
  %239 = vmatprep.subr.mxu0 0.0
  %240 = vmatpush2.msra.mxu0 0.0
  %241 = vmatprep.subr.mxu0 0.0
  %242 = vmatpush2.msra.mxu0 0.0
  %243 = vmatprep.mubr.f32.mxu0 0.0
  %244 = vmatmul.mubr.f32.gmra.mxu0 %v168
  %v245 = vpop.f32.mrf.mxu0
  %v246 = vadd.f32 %v164, %v245
  %v247 = vpop.f32.mrf.mxu0
  %248 = vmatprep.mubr.f32.mxu0 0.0
  %249 = vmatmul.mubr.f32.gmra.mxu0 %v171
  %v250 = vpop.f32.mrf.mxu0
  %v251 = vadd.f32 %v164, %v250
  %v252 = vpop.f32.mrf.mxu0
  %253 = vmatprep.mubr.f32.mxu0 0.0
  %254 = vmatmul.mubr.f32.gmra.mxu0 %v174
  %v255 = vpop.f32.mrf.mxu0
  %v256 = vadd.f32 %v164, %v255
  %v257 = vpop.f32.mrf.mxu0
  %258 = vmatprep.mubr.f32.mxu0 0.0
  %259 = vmatmul.mubr.f32.gmra.mxu0 %v177
  %v260 = vpop.f32.mrf.mxu0
  %v261 = vadd.f32 %v164, %v260
  %v262 = vpop.f32.mrf.mxu0
  %263 = vdwg.mxu0
  %v264 = vmax.f32 %v246, 0.0
  %v265 = vmax.f32 %v251, 0.0
  %v266 = vmax.f32 %v256, 0.0
  %v267 = vmax.f32 %v261, 0.0
  %v269 = vrot.slane %v267, 7
  %v274 = vrot.slane %v264, 7
  %v275 = vrot.slane %v265, 7
  %v276 = vsel %vm125, %v274, %v275
  %v277 = vrot.slane %v266, 7
  %v278 = vsel %vm125, %v275, %v277
  %v279 = vsel %vm125, %v277, %v269
  %v284 = vsel %vm125, %v269, %v274
  %v285 = vmul.f32 %v284, %v99
  %v286 = vmul.f32 %v276, %v100
  %v287 = vmul.f32 %v278, %v101
  %v288 = vmul.f32 %v279, %v102
  %289 = vrot.lane.b32.xlu0 %v264, 8
  %v290 = vpop.permute.xlu0 %289
  %291 = vrot.lane.b32.xlu0 %v265, 8
  %v292 = vpop.permute.xlu0 %291
  %293 = vrot.lane.b32.xlu0 %v266, 8
  %v294 = vpop.permute.xlu0 %293
  %295 = vrot.lane.b32.xlu0 %v267, 8
  %v296 = vpop.permute.xlu0 %295
  %v301 = vsel %vm166, %v285, %v290
  %v302 = vsel %vm166, %v286, %v292
  %v303 = vsel %vm166, %v287, %v294
  %v304 = vsel %vm166, %v288, %v296
  %v305 = vld [vmem:[%s3] sm:$0xff]
  %v306 = vld [vmem:[%s3 + $0x8] sm:$0xff]
  %v307 = vld [vmem:[%s4] sm:$0x1]
  %v309 = vlaneseq
  %v310 = vshrl.u32 %v309, 7
  %v311 = vsub.s32 0, %v310
  %v312 = vrot.slane %v307, %v311
  %vm314 = vcmask 130048
  %v316 = vsel %vm314, %v301, 0
  %v319 = vsel %vm314, %v302, 0
  %v322 = vsel %vm314, %v303, 0
  %v325 = vsel %vm314, %v304, 0
  %327 = vmatprep.subr.mxu0 0.0
  %328 = vmatpush1.msra.mxu0 0.0
  %329 = vmatprep.subr.mxu0 0.0
  %330 = vmatpush1.msra.mxu0 0.0
  %331 = vmatprep.subr.mxu0 0.0
  %332 = vmatpush1.msra.mxu0 0.0
  %333 = vmatprep.subr.mxu0 0.0
  %334 = vmatpush1.msra.mxu0 0.0
  %335 = vmatprep.subr.mxu0 0.0
  %336 = vmatpush1.msra.mxu0 0.0
  %337 = vmatprep.subr.mxu0 0.0
  %338 = vmatpush1.msra.mxu0 0.0
  %339 = vmatprep.subr.mxu0 0.0
  %340 = vmatpush1.msra.mxu0 0.0
  %341 = vmatprep.subr.mxu0 0.0
  %342 = vmatpush1.msra.mxu0 0.0
  %343 = vmatprep.subr.mxu0 0.0
  %344 = vmatpush1.msra.mxu0 0.0
  %345 = vmatprep.subr.mxu0 0.0
  %346 = vmatpush1.msra.mxu0 0.0
  %347 = vmatprep.subr.mxu0 0.0
  %348 = vmatpush1.msra.mxu0 0.0
  %349 = vmatprep.subr.mxu0 0.0
  %350 = vmatpush1.msra.mxu0 0.0
  %351 = vmatprep.subr.mxu0 0.0
  %352 = vmatpush1.msra.mxu0 0.0
  %353 = vmatprep.subr.mxu0 0.0
  %354 = vmatpush1.msra.mxu0 0.0
  %355 = vmatprep.subr.mxu0 0.0
  %356 = vmatpush1.msra.mxu0 %v306
  %357 = vmatprep.subr.mxu0 0.0
  %358 = vmatpush1.msra.mxu0 %v305
  %359 = vmatprep.subr.mxu0 0.0
  %360 = vmatpush2.msra.mxu0 0.0
  %361 = vmatprep.subr.mxu0 0.0
  %362 = vmatpush2.msra.mxu0 0.0
  %363 = vmatprep.subr.mxu0 0.0
  %364 = vmatpush2.msra.mxu0 0.0
  %365 = vmatprep.subr.mxu0 0.0
  %366 = vmatpush2.msra.mxu0 0.0
  %367 = vmatprep.subr.mxu0 0.0
  %368 = vmatpush2.msra.mxu0 0.0
  %369 = vmatprep.subr.mxu0 0.0
  %370 = vmatpush2.msra.mxu0 0.0
  %371 = vmatprep.subr.mxu0 0.0
  %372 = vmatpush2.msra.mxu0 0.0
  %373 = vmatprep.subr.mxu0 0.0
  %374 = vmatpush2.msra.mxu0 0.0
  %375 = vmatprep.subr.mxu0 0.0
  %376 = vmatpush2.msra.mxu0 0.0
  %377 = vmatprep.subr.mxu0 0.0
  %378 = vmatpush2.msra.mxu0 0.0
  %379 = vmatprep.subr.mxu0 0.0
  %380 = vmatpush2.msra.mxu0 0.0
  %381 = vmatprep.subr.mxu0 0.0
  %382 = vmatpush2.msra.mxu0 0.0
  %383 = vmatprep.subr.mxu0 0.0
  %384 = vmatpush2.msra.mxu0 0.0
  %385 = vmatprep.subr.mxu0 0.0
  %386 = vmatpush2.msra.mxu0 0.0
  %387 = vmatprep.subr.mxu0 0.0
  %388 = vmatpush2.msra.mxu0 0.0
  %389 = vmatprep.subr.mxu0 0.0
  %390 = vmatpush2.msra.mxu0 0.0
  %391 = vmatprep.mubr.f32.mxu0 0.0
  %392 = vmatmul.mubr.f32.gmra.mxu0 %v316
  %v393 = vpop.f32.mrf.mxu0
  %v394 = vadd.f32 %v312, %v393
  %v395 = vpop.f32.mrf.mxu0
  %396 = vmatprep.mubr.f32.mxu0 0.0
  %397 = vmatmul.mubr.f32.gmra.mxu0 %v319
  %v398 = vpop.f32.mrf.mxu0
  %v399 = vadd.f32 %v312, %v398
  %v400 = vpop.f32.mrf.mxu0
  %401 = vmatprep.mubr.f32.mxu0 0.0
  %402 = vmatmul.mubr.f32.gmra.mxu0 %v322
  %v403 = vpop.f32.mrf.mxu0
  %v404 = vadd.f32 %v312, %v403
  %v405 = vpop.f32.mrf.mxu0
  %406 = vmatprep.mubr.f32.mxu0 0.0
  %407 = vmatmul.mubr.f32.gmra.mxu0 %v325
  %v408 = vpop.f32.mrf.mxu0
  %v409 = vadd.f32 %v312, %v408
  %v410 = vpop.f32.mrf.mxu0
  %411 = vdwg.mxu0
  %v412 = vmax.f32 %v394, 0.0
  %v413 = vmax.f32 %v399, 0.0
  %v414 = vmax.f32 %v404, 0.0
  %v415 = vmax.f32 %v409, 0.0
  %v416 = vld [vmem:[%s5] sm:$0xf]
  %v417 = vld [vmem:[%s6] sm:$0x1]
  %v419 = vlaneseq
  %v420 = vshrl.u32 %v419, 7
  %v421 = vsub.s32 0, %v420
  %v422 = vrot.slane %v417, %v421
  %v424 = vsel %vm153, %v115, 0
  %v426 = vsel %vm153, %v116, 0
  %v428 = vsel %vm153, %v117, 0
  %v430 = vsel %vm153, %v118, 0
  %vm432 = vcmask 1043456
  %v434 = vsel %vm432, %v416, 0
  %436 = vmatprep.subr.mxu0 0.0
  %437 = vmatpush1.msra.mxu0 0.0
  %438 = vmatprep.subr.mxu0 0.0
  %439 = vmatpush1.msra.mxu0 0.0
  %440 = vmatprep.subr.mxu0 0.0
  %441 = vmatpush1.msra.mxu0 0.0
  %442 = vmatprep.subr.mxu0 0.0
  %443 = vmatpush1.msra.mxu0 0.0
  %444 = vmatprep.subr.mxu0 0.0
  %445 = vmatpush1.msra.mxu0 0.0
  %446 = vmatprep.subr.mxu0 0.0
  %447 = vmatpush1.msra.mxu0 0.0
  %448 = vmatprep.subr.mxu0 0.0
  %449 = vmatpush1.msra.mxu0 0.0
  %450 = vmatprep.subr.mxu0 0.0
  %451 = vmatpush1.msra.mxu0 0.0
  %452 = vmatprep.subr.mxu0 0.0
  %453 = vmatpush1.msra.mxu0 0.0
  %454 = vmatprep.subr.mxu0 0.0
  %455 = vmatpush1.msra.mxu0 0.0
  %456 = vmatprep.subr.mxu0 0.0
  %457 = vmatpush1.msra.mxu0 0.0
  %458 = vmatprep.subr.mxu0 0.0
  %459 = vmatpush1.msra.mxu0 0.0
  %460 = vmatprep.subr.mxu0 0.0
  %461 = vmatpush1.msra.mxu0 0.0
  %462 = vmatprep.subr.mxu0 0.0
  %463 = vmatpush1.msra.mxu0 0.0
  %464 = vmatprep.subr.mxu0 0.0
  %465 = vmatpush1.msra.mxu0 0.0
  %466 = vmatprep.subr.mxu0 0.0
  %467 = vmatpush1.msra.mxu0 %v434
  %468 = vmatprep.subr.mxu0 0.0
  %469 = vmatpush2.msra.mxu0 0.0
  %470 = vmatprep.subr.mxu0 0.0
  %471 = vmatpush2.msra.mxu0 0.0
  %472 = vmatprep.subr.mxu0 0.0
  %473 = vmatpush2.msra.mxu0 0.0
  %474 = vmatprep.subr.mxu0 0.0
  %475 = vmatpush2.msra.mxu0 0.0
  %476 = vmatprep.subr.mxu0 0.0
  %477 = vmatpush2.msra.mxu0 0.0
  %478 = vmatprep.subr.mxu0 0.0
  %479 = vmatpush2.msra.mxu0 0.0
  %480 = vmatprep.subr.mxu0 0.0
  %481 = vmatpush2.msra.mxu0 0.0
  %482 = vmatprep.subr.mxu0 0.0
  %483 = vmatpush2.msra.mxu0 0.0
  %484 = vmatprep.subr.mxu0 0.0
  %485 = vmatpush2.msra.mxu0 0.0
  %486 = vmatprep.subr.mxu0 0.0
  %487 = vmatpush2.msra.mxu0 0.0
  %488 = vmatprep.subr.mxu0 0.0
  %489 = vmatpush2.msra.mxu0 0.0
  %490 = vmatprep.subr.mxu0 0.0
  %491 = vmatpush2.msra.mxu0 0.0
  %492 = vmatprep.subr.mxu0 0.0
  %493 = vmatpush2.msra.mxu0 0.0
  %494 = vmatprep.subr.mxu0 0.0
  %495 = vmatpush2.msra.mxu0 0.0
  %496 = vmatprep.subr.mxu0 0.0
  %497 = vmatpush2.msra.mxu0 0.0
  %498 = vmatprep.subr.mxu0 0.0
  %499 = vmatpush2.msra.mxu0 0.0
  %500 = vmatprep.mubr.f32.mxu0 0.0
  %501 = vmatmul.mubr.f32.gmra.mxu0 %v424
  %v502 = vpop.f32.mrf.mxu0
  %v503 = vadd.f32 %v422, %v502
  %v504 = vpop.f32.mrf.mxu0
  %505 = vmatprep.mubr.f32.mxu0 0.0
  %506 = vmatmul.mubr.f32.gmra.mxu0 %v426
  %v507 = vpop.f32.mrf.mxu0
  %v508 = vadd.f32 %v422, %v507
  %v509 = vpop.f32.mrf.mxu0
  %510 = vmatprep.mubr.f32.mxu0 0.0
  %511 = vmatmul.mubr.f32.gmra.mxu0 %v428
  %v512 = vpop.f32.mrf.mxu0
  %v513 = vadd.f32 %v422, %v512
  %v514 = vpop.f32.mrf.mxu0
  %515 = vmatprep.mubr.f32.mxu0 0.0
  %516 = vmatmul.mubr.f32.gmra.mxu0 %v430
  %v517 = vpop.f32.mrf.mxu0
  %v518 = vadd.f32 %v422, %v517
  %v519 = vpop.f32.mrf.mxu0
  %520 = vdwg.mxu0
  %v521 = vadd.f32 %v412, %v503
  %v522 = vadd.f32 %v413, %v508
  %v523 = vadd.f32 %v414, %v513
  %v524 = vadd.f32 %v415, %v518
  %v525 = vmax.f32 %v521, 0.0
  %v526 = vmax.f32 %v522, 0.0
  %v527 = vmax.f32 %v523, 0.0
  %v528 = vmax.f32 %v524, 0.0
  %v530 = vrot.slane %v528, 6
  %vm535 = vcmask 1041408
  %v536 = vrot.slane %v525, 6
  %v537 = vrot.slane %v526, 6
  %v538 = vsel %vm535, %v536, %v537
  %v539 = vrot.slane %v527, 6
  %v540 = vsel %vm535, %v537, %v539
  %v541 = vsel %vm535, %v539, %v530
  %v546 = vsel %vm535, %v530, %v536
  %v547 = vmul.f32 %v546, %v111
  %v548 = vmul.f32 %v538, %v112
  %v549 = vmul.f32 %v540, %v113
  %v550 = vmul.f32 %v541, %v114
  %551 = vrot.lane.b32.xlu0 %v525, 8
  %v552 = vpop.permute.xlu0 %551
  %553 = vrot.lane.b32.xlu0 %v526, 8
  %v554 = vpop.permute.xlu0 %553
  %555 = vrot.lane.b32.xlu0 %v527, 8
  %v556 = vpop.permute.xlu0 %555
  %557 = vrot.lane.b32.xlu0 %v528, 8
  %v558 = vpop.permute.xlu0 %557
  %v563 = vsel %vm166, %v547, %v552
  %v564 = vsel %vm166, %v548, %v554
  %v565 = vsel %vm166, %v549, %v556
  %v566 = vsel %vm166, %v550, %v558
  %v567 = vld [vmem:[%s7] sm:$0xff]
  %v568 = vld [vmem:[%s7 + $0x8] sm:$0xff]
  %v569 = vld [vmem:[%s8] sm:$0x1]
  %v571 = vlaneseq
  %v572 = vshrl.u32 %v571, 7
  %v573 = vsub.s32 0, %v572
  %v574 = vrot.slane %v569, %v573
  %v577 = vsel %vm314, %v563, 0
  %v580 = vsel %vm314, %v564, 0
  %v583 = vsel %vm314, %v565, 0
  %v586 = vsel %vm314, %v566, 0
  %588 = vmatprep.subr.mxu0 0.0
  %589 = vmatpush1.msra.mxu0 0.0
  %590 = vmatprep.subr.mxu0 0.0
  %591 = vmatpush1.msra.mxu0 0.0
  %592 = vmatprep.subr.mxu0 0.0
  %593 = vmatpush1.msra.mxu0 0.0
  %594 = vmatprep.subr.mxu0 0.0
  %595 = vmatpush1.msra.mxu0 0.0
  %596 = vmatprep.subr.mxu0 0.0
  %597 = vmatpush1.msra.mxu0 0.0
  %598 = vmatprep.subr.mxu0 0.0
  %599 = vmatpush1.msra.mxu0 0.0
  %600 = vmatprep.subr.mxu0 0.0
  %601 = vmatpush1.msra.mxu0 0.0
  %602 = vmatprep.subr.mxu0 0.0
  %603 = vmatpush1.msra.mxu0 0.0
  %604 = vmatprep.subr.mxu0 0.0
  %605 = vmatpush1.msra.mxu0 0.0
  %606 = vmatprep.subr.mxu0 0.0
  %607 = vmatpush1.msra.mxu0 0.0
  %608 = vmatprep.subr.mxu0 0.0
  %609 = vmatpush1.msra.mxu0 0.0
  %610 = vmatprep.subr.mxu0 0.0
  %611 = vmatpush1.msra.mxu0 0.0
  %612 = vmatprep.subr.mxu0 0.0
  %613 = vmatpush1.msra.mxu0 0.0
  %614 = vmatprep.subr.mxu0 0.0
  %615 = vmatpush1.msra.mxu0 0.0
  %616 = vmatprep.subr.mxu0 0.0
  %617 = vmatpush1.msra.mxu0 %v568
  %618 = vmatprep.subr.mxu0 0.0
  %619 = vmatpush1.msra.mxu0 %v567
  %620 = vmatprep.subr.mxu0 0.0
  %621 = vmatpush2.msra.mxu0 0.0
  %622 = vmatprep.subr.mxu0 0.0
  %623 = vmatpush2.msra.mxu0 0.0
  %624 = vmatprep.subr.mxu0 0.0
  %625 = vmatpush2.msra.mxu0 0.0
  %626 = vmatprep.subr.mxu0 0.0
  %627 = vmatpush2.msra.mxu0 0.0
  %628 = vmatprep.subr.mxu0 0.0
  %629 = vmatpush2.msra.mxu0 0.0
  %630 = vmatprep.subr.mxu0 0.0
  %631 = vmatpush2.msra.mxu0 0.0
  %632 = vmatprep.subr.mxu0 0.0
  %633 = vmatpush2.msra.mxu0 0.0
  %634 = vmatprep.subr.mxu0 0.0
  %635 = vmatpush2.msra.mxu0 0.0
  %636 = vmatprep.subr.mxu0 0.0
  %637 = vmatpush2.msra.mxu0 0.0
  %638 = vmatprep.subr.mxu0 0.0
  %639 = vmatpush2.msra.mxu0 0.0
  %640 = vmatprep.subr.mxu0 0.0
  %641 = vmatpush2.msra.mxu0 0.0
  %642 = vmatprep.subr.mxu0 0.0
  %643 = vmatpush2.msra.mxu0 0.0
  %644 = vmatprep.subr.mxu0 0.0
  %645 = vmatpush2.msra.mxu0 0.0
  %646 = vmatprep.subr.mxu0 0.0
  %647 = vmatpush2.msra.mxu0 0.0
  %648 = vmatprep.subr.mxu0 0.0
  %649 = vmatpush2.msra.mxu0 0.0
  %650 = vmatprep.subr.mxu0 0.0
  %651 = vmatpush2.msra.mxu0 0.0
  %652 = vmatprep.mubr.f32.mxu0 0.0
  %653 = vmatmul.mubr.f32.gmra.mxu0 %v577
  %v654 = vpop.f32.mrf.mxu0
  %v655 = vadd.f32 %v574, %v654
  %v656 = vpop.f32.mrf.mxu0
  %657 = vmatprep.mubr.f32.mxu0 0.0
  %658 = vmatmul.mubr.f32.gmra.mxu0 %v580
  %v659 = vpop.f32.mrf.mxu0
  %v660 = vadd.f32 %v574, %v659
  %v661 = vpop.f32.mrf.mxu0
  %662 = vmatprep.mubr.f32.mxu0 0.0
  %663 = vmatmul.mubr.f32.gmra.mxu0 %v583
  %v664 = vpop.f32.mrf.mxu0
  %v665 = vadd.f32 %v574, %v664
  %v666 = vpop.f32.mrf.mxu0
  %667 = vmatprep.mubr.f32.mxu0 0.0
  %668 = vmatmul.mubr.f32.gmra.mxu0 %v586
  %v669 = vpop.f32.mrf.mxu0
  %v670 = vadd.f32 %v574, %v669
  %v671 = vpop.f32.mrf.mxu0
  %672 = vdwg.mxu0
  %v673 = vmax.f32 %v655, 0.0
  %v674 = vmax.f32 %v660, 0.0
  %v675 = vmax.f32 %v665, 0.0
  %v676 = vmax.f32 %v670, 0.0
  %v678 = vrot.slane %v676, 6
  %v683 = vrot.slane %v673, 6
  %v684 = vrot.slane %v674, 6
  %v685 = vsel %vm535, %v683, %v684
  %v686 = vrot.slane %v675, 6
  %v687 = vsel %vm535, %v684, %v686
  %v688 = vsel %vm535, %v686, %v678
  %v693 = vsel %vm535, %v678, %v683
  %v694 = vmul.f32 %v693, %v111
  %v695 = vmul.f32 %v685, %v112
  %v696 = vmul.f32 %v687, %v113
  %v697 = vmul.f32 %v688, %v114
  %698 = vrot.lane.b32.xlu0 %v673, 8
  %v699 = vpop.permute.xlu0 %698
  %700 = vrot.lane.b32.xlu0 %v674, 8
  %v701 = vpop.permute.xlu0 %700
  %702 = vrot.lane.b32.xlu0 %v675, 8
  %v703 = vpop.permute.xlu0 %702
  %704 = vrot.lane.b32.xlu0 %v676, 8
  %v705 = vpop.permute.xlu0 %704
  %v710 = vsel %vm166, %v694, %v699
  %v711 = vsel %vm166, %v695, %v701
  %v712 = vsel %vm166, %v696, %v703
  %v713 = vsel %vm166, %v697, %v705
  %v714 = vld [vmem:[%s9] sm:$0xff]
  %v715 = vld [vmem:[%s9 + $0x8] sm:$0xff]
  %v716 = vld [vmem:[%s10] sm:$0x1]
  %v718 = vlaneseq
  %v719 = vshrl.u32 %v718, 7
  %v720 = vsub.s32 0, %v719
  %v721 = vrot.slane %v716, %v720
  %v724 = vsel %vm314, %v710, 0
  %v727 = vsel %vm314, %v711, 0
  %v730 = vsel %vm314, %v712, 0
  %v733 = vsel %vm314, %v713, 0
  %735 = vmatprep.subr.mxu0 0.0
  %736 = vmatpush1.msra.mxu0 0.0
  %737 = vmatprep.subr.mxu0 0.0
  %738 = vmatpush1.msra.mxu0 0.0
  %739 = vmatprep.subr.mxu0 0.0
  %740 = vmatpush1.msra.mxu0 0.0
  %741 = vmatprep.subr.mxu0 0.0
  %742 = vmatpush1.msra.mxu0 0.0
  %743 = vmatprep.subr.mxu0 0.0
  %744 = vmatpush1.msra.mxu0 0.0
  %745 = vmatprep.subr.mxu0 0.0
  %746 = vmatpush1.msra.mxu0 0.0
  %747 = vmatprep.subr.mxu0 0.0
  %748 = vmatpush1.msra.mxu0 0.0
  %749 = vmatprep.subr.mxu0 0.0
  %750 = vmatpush1.msra.mxu0 0.0
  %751 = vmatprep.subr.mxu0 0.0
  %752 = vmatpush1.msra.mxu0 0.0
  %753 = vmatprep.subr.mxu0 0.0
  %754 = vmatpush1.msra.mxu0 0.0
  %755 = vmatprep.subr.mxu0 0.0
  %756 = vmatpush1.msra.mxu0 0.0
  %757 = vmatprep.subr.mxu0 0.0
  %758 = vmatpush1.msra.mxu0 0.0
  %759 = vmatprep.subr.mxu0 0.0
  %760 = vmatpush1.msra.mxu0 0.0
  %761 = vmatprep.subr.mxu0 0.0
  %762 = vmatpush1.msra.mxu0 0.0
  %763 = vmatprep.subr.mxu0 0.0
  %764 = vmatpush1.msra.mxu0 %v715
  %765 = vmatprep.subr.mxu0 0.0
  %766 = vmatpush1.msra.mxu0 %v714
  %767 = vmatprep.subr.mxu0 0.0
  %768 = vmatpush2.msra.mxu0 0.0
  %769 = vmatprep.subr.mxu0 0.0
  %770 = vmatpush2.msra.mxu0 0.0
  %771 = vmatprep.subr.mxu0 0.0
  %772 = vmatpush2.msra.mxu0 0.0
  %773 = vmatprep.subr.mxu0 0.0
  %774 = vmatpush2.msra.mxu0 0.0
  %775 = vmatprep.subr.mxu0 0.0
  %776 = vmatpush2.msra.mxu0 0.0
  %777 = vmatprep.subr.mxu0 0.0
  %778 = vmatpush2.msra.mxu0 0.0
  %779 = vmatprep.subr.mxu0 0.0
  %780 = vmatpush2.msra.mxu0 0.0
  %781 = vmatprep.subr.mxu0 0.0
  %782 = vmatpush2.msra.mxu0 0.0
  %783 = vmatprep.subr.mxu0 0.0
  %784 = vmatpush2.msra.mxu0 0.0
  %785 = vmatprep.subr.mxu0 0.0
  %786 = vmatpush2.msra.mxu0 0.0
  %787 = vmatprep.subr.mxu0 0.0
  %788 = vmatpush2.msra.mxu0 0.0
  %789 = vmatprep.subr.mxu0 0.0
  %790 = vmatpush2.msra.mxu0 0.0
  %791 = vmatprep.subr.mxu0 0.0
  %792 = vmatpush2.msra.mxu0 0.0
  %793 = vmatprep.subr.mxu0 0.0
  %794 = vmatpush2.msra.mxu0 0.0
  %795 = vmatprep.subr.mxu0 0.0
  %796 = vmatpush2.msra.mxu0 0.0
  %797 = vmatprep.subr.mxu0 0.0
  %798 = vmatpush2.msra.mxu0 0.0
  %799 = vmatprep.mubr.f32.mxu0 0.0
  %800 = vmatmul.mubr.f32.gmra.mxu0 %v724
  %v801 = vpop.f32.mrf.mxu0
  %v802 = vadd.f32 %v721, %v801
  %v803 = vpop.f32.mrf.mxu0
  %804 = vmatprep.mubr.f32.mxu0 0.0
  %805 = vmatmul.mubr.f32.gmra.mxu0 %v727
  %v806 = vpop.f32.mrf.mxu0
  %v807 = vadd.f32 %v721, %v806
  %v808 = vpop.f32.mrf.mxu0
  %809 = vmatprep.mubr.f32.mxu0 0.0
  %810 = vmatmul.mubr.f32.gmra.mxu0 %v730
  %v811 = vpop.f32.mrf.mxu0
  %v812 = vadd.f32 %v721, %v811
  %v813 = vpop.f32.mrf.mxu0
  %814 = vmatprep.mubr.f32.mxu0 0.0
  %815 = vmatmul.mubr.f32.gmra.mxu0 %v733
  %v816 = vpop.f32.mrf.mxu0
  %v817 = vadd.f32 %v721, %v816
  %v818 = vpop.f32.mrf.mxu0
  %819 = vdwg.mxu0
  %v820 = vmax.f32 %v802, 0.0
  %v821 = vmax.f32 %v807, 0.0
  %v822 = vmax.f32 %v812, 0.0
  %v823 = vmax.f32 %v817, 0.0
  %v824 = vadd.f32 %v820, %v525
  %v825 = vadd.f32 %v821, %v526
  %v826 = vadd.f32 %v822, %v527
  %v827 = vadd.f32 %v823, %v528
  %v828 = vmax.f32 %v824, 0.0
  %v829 = vmax.f32 %v825, 0.0
  %v830 = vmax.f32 %v826, 0.0
  %v831 = vmax.f32 %v827, 0.0
  %832 = vst.msk [vmem:[%s11] sm:$0xff] %vm166, %v828
  %833 = vst.msk [vmem:[%s11 + $0x8] sm:$0xff] %vm166, %v829
  %834 = vst.msk [vmem:[%s11 + $0x10] sm:$0xff] %vm166, %v830
  %835 = vst.msk [vmem:[%s11 + $0x18] sm:$0xff] %vm166, %v831
  // Predicated region
  $region46: #{tpu_custom_call.1} parent=0 // pred_check
    _
  $region47: #{tpu_custom_call.1} parent=0 // pred_check_branch
    %837 = sbr.rel (0) target = $region49
  $region48: #{tpu_custom_call.1} parent=0 // pred_region
    _
  $region49: #{tpu_custom_call.1} parent=0 // pred_fallthru
    _
  // Predicated region
  $region50: #{tpu_custom_call.1} parent=0 // pred_check
    _
  $region51: #{tpu_custom_call.1} parent=0 // pred_check_branch
    %839 = sbr.rel (0) target = $region53
  $region52: #{tpu_custom_call.1} parent=0 // pred_region
    _
  $region53: #{tpu_custom_call.1} parent=0 // pred_fallthru
    _

</llo_original>
